<compile_context>
chip_gen: v7x
topology: tpu7x:2x2x1
jax: 0.10.0
libtpu: 0.0.40
codegen_flags: <defaults>
</compile_context>

<pallas_src>
import functools

import jax
import jax.numpy as jnp
from jax.experimental import pallas as pl
from jax.experimental.pallas import tpu as pltpu

RISK_DIM = 10
INPUT_DIM = 11              # 10-D risk state + 1 kelly suggestion (concat in wrapper)
HIDDEN_DIMS = (128, 64, 32)
NUM_CONTRACTS = 5
OUT_WIDTH = 8               # lane-packed output: 5 probs + 1 confidence + 2 pad
LN_EPS = 1e-5               # PyTorch nn.LayerNorm default
TB_MAX = 2048               # batch tile (see VMEM accounting above)


def _round_up(x, m):
    return ((x + m - 1) // m) * m


def _layernorm(x, gamma, beta, eps=LN_EPS):
    """One-pass LayerNorm in f32: both cross-lane reduces issue back-to-back."""
    inv_n = 1.0 / x.shape[-1]
    s = jnp.sum(x, axis=-1, keepdims=True)
    s2 = jnp.sum(x * x, axis=-1, keepdims=True)
    mean = s * inv_n
    var = jnp.maximum(s2 * inv_n - mean * mean, 0.0)
    return (x - mean) * jax.lax.rsqrt(var + eps) * gamma + beta


def position_sizing_kernel(x_ref, w1_ref, w2_ref, w3_ref, wh1_ref, wh2_ref,
                           vec_ref, out_ref):
    d0, d1, d2 = HIDDEN_DIMS
    vec = vec_ref[...]                         # (16,128) f32: all biases/LN params

    x = x_ref[...].astype(jnp.bfloat16)        # (tb, 11) bf16 MXU feed

    # ---- layer 1 (kelly already concatenated into x in the wrapper) ----
    h = jnp.dot(x, w1_ref[...], preferred_element_type=jnp.float32) + vec[0:1, :d0]
    h = jnp.maximum(_layernorm(h, vec[1:2, :d0], vec[2:3, :d0]), 0.0)

    # ---- layer 2 ----
    h = jnp.dot(h.astype(jnp.bfloat16), w2_ref[...],
                preferred_element_type=jnp.float32) + vec[3:4, :d1]
    h = jnp.maximum(_layernorm(h, vec[4:5, :d1], vec[5:6, :d1]), 0.0)

    # ---- layer 3 ----
    h = jnp.dot(h.astype(jnp.bfloat16), w3_ref[...],
                preferred_element_type=jnp.float32) + vec[6:7, :d2]
    feat = jnp.maximum(_layernorm(h, vec[7:8, :d2], vec[8:9, :d2]), 0.0)

    # ---- fused heads: [ws1|wc1] -> (tb,48) ReLU, block-diag(ws2,wc2) -> (tb,8) ----
    hh = jnp.dot(feat.astype(jnp.bfloat16), wh1_ref[...],
                 preferred_element_type=jnp.float32) + vec[9:10, :48]
    hh = jnp.maximum(hh, 0.0)
    z = jnp.dot(hh.astype(jnp.bfloat16), wh2_ref[...],
                preferred_element_type=jnp.float32) + vec[10:11, :OUT_WIDTH]

    # ---- lane-masked epilogue: no slices / concatenate, dead lanes explicit ----
    lane = jax.lax.broadcasted_iota(jnp.int32, z.shape, dimension=1)
    zl = jnp.where(lane < NUM_CONTRACTS, z, -jnp.inf)      # mask BEFORE max/exp
    zl = zl - jnp.max(zl, axis=-1, keepdims=True)
    e = jnp.exp(zl)                                        # dead lanes -> exp(-inf) = 0
    probs = e * pl.reciprocal(jnp.sum(e, axis=-1, keepdims=True), approx=True)
    conf = 0.5 * jnp.tanh(0.5 * z) + 0.5                   # sigmoid via EUP tanh
    out_ref[...] = jnp.where(lane == NUM_CONTRACTS, conf, probs)


def position_sizing_forward(risk_state, kelly_suggestion, packed_params, *, tb_max=TB_MAX):
    """risk_state: [B,10] f32, kelly_suggestion: [B] f32 -> (probs [B,5], conf [B,1])."""
    risk = risk_state.astype(jnp.float32)
    kelly = kelly_suggestion.astype(jnp.float32).reshape(-1, 1)
    x = jnp.concatenate([risk, kelly], axis=-1)            # (B, 11)
    b = x.shape[0]

    # Tile selection: for b >= 512 force >= 2 tiles so v7x's two TensorCores
    # both get work on the "parallel" axis; otherwise one 8-aligned tile.
    if b >= 512:
        tb = min(tb_max, _round_up(-(-b // 2), 8))
    else:
        tb = _round_up(b, 8)
    bp = _round_up(b, tb)
    if bp != b:
        x = jnp.pad(x, ((0, bp - b), (0, 0)))
    nb = bp // tb

    # Weights (bf16) and the packed bias/LN vector block (f32) all use constant
    # index_maps -> fetched once, VMEM-resident across the grid.
    param_specs = [pl.BlockSpec(p.shape, lambda i: (0, 0)) for p in packed_params]

    out = pl.pallas_call(
        position_sizing_kernel,
        out_shape=jax.ShapeDtypeStruct((bp, OUT_WIDTH), jnp.float32),
        grid=(nb,),
        in_specs=[pl.BlockSpec((tb, INPUT_DIM), lambda i: (i, 0))] + param_specs,
        out_specs=pl.BlockSpec((tb, OUT_WIDTH), lambda i: (i, 0)),
        compiler_params=pltpu.CompilerParams(
            dimension_semantics=("parallel",),
            vmem_limit_bytes=32 * 1024 * 1024),
    )(x, *packed_params)

    probs = out[:b, :NUM_CONTRACTS]
    conf = out[:b, NUM_CONTRACTS:NUM_CONTRACTS + 1]
    return probs, conf


# ----------------------------------------------------------------------------
# Parameter construction (matches the PyTorch module's init: Xavier-uniform
# Linear weights, zero biases, LayerNorm gamma=1 / beta=0).
# ----------------------------------------------------------------------------
def _xavier_uniform(key, fan_in, fan_out):
    limit = (6.0 / (fan_in + fan_out)) ** 0.5
    return jax.random.uniform(key, (fan_in, fan_out), jnp.float32, -limit, limit)


def init_raw_params(key):
    """Raw per-layer params, mirroring the PyTorch module structure."""
    ks = jax.random.split(key, 7)
    d0, d1, d2 = HIDDEN_DIMS
    return {
        "w1": _xavier_uniform(ks[0], INPUT_DIM, d0), "b1": jnp.zeros((1, d0)),
        "g1": jnp.ones((1, d0)), "be1": jnp.zeros((1, d0)),
        "w2": _xavier_uniform(ks[1], d0, d1), "b2": jnp.zeros((1, d1)),
        "g2": jnp.ones((1, d1)), "be2": jnp.zeros((1, d1)),
        "w3": _xavier_uniform(ks[2], d1, d2), "b3": jnp.zeros((1, d2)),
        "g3": jnp.ones((1, d2)), "be3": jnp.zeros((1, d2)),
        "ws1": _xavier_uniform(ks[3], d2, 32), "bs1": jnp.zeros((1, 32)),
        "ws2": _xavier_uniform(ks[4], 32, NUM_CONTRACTS), "bs2": jnp.zeros((1, NUM_CONTRACTS)),
        "wc1": _xavier_uniform(ks[5], d2, 16), "bc1": jnp.zeros((1, 16)),
        "wc2": _xavier_uniform(ks[6], 16, 1), "bc2": jnp.zeros((1, 1)),
    }


def pack_params(raw):
    """Pack raw params into the fused kernel layout (done once, outside the kernel)."""
    d0, d1, d2 = HIDDEN_DIMS
    # Weights -> bf16 for single-pass MXU matmuls.
    w1 = raw["w1"].astype(jnp.bfloat16)                                     # (11,128)
    w2 = raw["w2"].astype(jnp.bfloat16)                                     # (128,64)
    w3 = raw["w3"].astype(jnp.bfloat16)                                     # (64,32)
    wh1 = jnp.concatenate([raw["ws1"], raw["wc1"]], axis=1).astype(jnp.bfloat16)  # (32,48)
    wh2 = jnp.zeros((48, OUT_WIDTH), jnp.float32)                           # block-diag, lane-padded
    wh2 = wh2.at[:32, :NUM_CONTRACTS].set(raw["ws2"])
    wh2 = wh2.at[32:, NUM_CONTRACTS].set(raw["wc2"][:, 0])
    wh2 = wh2.astype(jnp.bfloat16)

    # All bias / gamma / beta vectors packed into a single f32 (16,128) block.
    bh1 = jnp.concatenate([raw["bs1"], raw["bc1"]], axis=1)[0]              # (48,)
    bh2 = jnp.zeros((OUT_WIDTH,), jnp.float32)
    bh2 = bh2.at[:NUM_CONTRACTS].set(raw["bs2"][0]).at[NUM_CONTRACTS].set(raw["bc2"][0, 0])

    vec = jnp.zeros((16, 128), jnp.float32)
    vec = vec.at[0, :d0].set(raw["b1"][0])
    vec = vec.at[1, :d0].set(raw["g1"][0])
    vec = vec.at[2, :d0].set(raw["be1"][0])
    vec = vec.at[3, :d1].set(raw["b2"][0])
    vec = vec.at[4, :d1].set(raw["g2"][0])
    vec = vec.at[5, :d1].set(raw["be2"][0])
    vec = vec.at[6, :d2].set(raw["b3"][0])
    vec = vec.at[7, :d2].set(raw["g3"][0])
    vec = vec.at[8, :d2].set(raw["be3"][0])
    vec = vec.at[9, :48].set(bh1)
    vec = vec.at[10, :OUT_WIDTH].set(bh2)

    return (w1, w2, w3, wh1, wh2, vec)


def reference_forward(risk, kelly, raw):
    """Pure-JAX f32 reference mirroring the PyTorch module (eval mode)."""
    def ln(x, g, b):
        m = jnp.mean(x, -1, keepdims=True)
        v = jnp.mean((x - m) ** 2, -1, keepdims=True)
        return (x - m) / jnp.sqrt(v + LN_EPS) * g + b

    x = jnp.concatenate([risk, kelly[:, None]], axis=-1)
    h = jnp.maximum(ln(x @ raw["w1"] + raw["b1"], raw["g1"], raw["be1"]), 0.0)
    h = jnp.maximum(ln(h @ raw["w2"] + raw["b2"], raw["g2"], raw["be2"]), 0.0)
    f = jnp.maximum(ln(h @ raw["w3"] + raw["b3"], raw["g3"], raw["be3"]), 0.0)
    s = jnp.maximum(f @ raw["ws1"] + raw["bs1"], 0.0)
    probs = jax.nn.softmax(s @ raw["ws2"] + raw["bs2"], axis=-1)
    c = jnp.maximum(f @ raw["wc1"] + raw["bc1"], 0.0)
    conf = jax.nn.sigmoid(c @ raw["wc2"] + raw["bc2"])
    return probs, conf


if __name__ == "__main__":
    key = jax.random.PRNGKey(0)
    k_params, k_state, k_kelly = jax.random.split(key, 3)

    raw_params = init_raw_params(k_params)
    packed = pack_params(raw_params)

    batch = 8
    risk_state = jax.random.normal(k_state, (batch, RISK_DIM), dtype=jnp.float32)
    kelly_suggestion = jax.random.uniform(k_kelly, (batch,), dtype=jnp.float32)

    fwd = jax.jit(functools.partial(position_sizing_forward, packed_params=packed))
    action_probs, confidence = fwd(risk_state, kelly_suggestion)
    jax.block_until_ready((action_probs, confidence))

    assert action_probs.shape == (batch, NUM_CONTRACTS)
    assert confidence.shape == (batch, 1)

    ref_probs, ref_conf = reference_forward(risk_state, kelly_suggestion, raw_params)
    # bf16 MXU operands + approx EUP reciprocal -> tolerance vs. the f32 reference.
    assert bool(jnp.all(jnp.abs(action_probs - ref_probs) < 5e-2))
    assert bool(jnp.all(jnp.abs(confidence - ref_conf) < 5e-2))
    assert bool(jnp.all(jnp.abs(jnp.sum(action_probs, axis=-1) - 1.0) < 1e-2))
    assert bool(jnp.all((confidence >= 0.0) & (confidence <= 1.0)))

    print("KERNEL_OK")
</pallas_src>

<mosaic_0001>
module attributes {stable_mosaic.version = 11 : i64} {
  func.func @position_sizing_kernel(%arg0: i32, %arg1: memref<8x11xf32, #tpu.memory_space<vmem>>, %arg2: memref<11x128xbf16, #tpu.memory_space<vmem>>, %arg3: memref<128x64xbf16, #tpu.memory_space<vmem>>, %arg4: memref<64x32xbf16, #tpu.memory_space<vmem>>, %arg5: memref<32x48xbf16, #tpu.memory_space<vmem>>, %arg6: memref<48x8xbf16, #tpu.memory_space<vmem>>, %arg7: memref<16x128xf32, #tpu.memory_space<vmem>>, %arg8: memref<8x8xf32, #tpu.memory_space<vmem>>) attributes {dimension_semantics = [#tpu.dimension_semantics<parallel>], iteration_bounds = array<i64: 1>, scalar_prefetch = 0 : i64, scratch_operands = 0 : i64, tpu.core_type = #tpu.core_type<tc>, window_params = [{transform_indices = @transform_0, window_bounds = array<i64: 8, 11>}, {pipeline_mode = #tpu.pipeline_mode<synchronous>, transform_indices = @transform_1, window_bounds = array<i64: 11, 128>}, {pipeline_mode = #tpu.pipeline_mode<synchronous>, transform_indices = @transform_2, window_bounds = array<i64: 128, 64>}, {pipeline_mode = #tpu.pipeline_mode<synchronous>, transform_indices = @transform_3, window_bounds = array<i64: 64, 32>}, {pipeline_mode = #tpu.pipeline_mode<synchronous>, transform_indices = @transform_4, window_bounds = array<i64: 32, 48>}, {pipeline_mode = #tpu.pipeline_mode<synchronous>, transform_indices = @transform_5, window_bounds = array<i64: 48, 8>}, {pipeline_mode = #tpu.pipeline_mode<synchronous>, transform_indices = @transform_6, window_bounds = array<i64: 16, 128>}, {transform_indices = @transform_7, window_bounds = array<i64: 8, 8>}]} {
    %c0 = arith.constant 0 : index
    %c0_0 = arith.constant 0 : index
    %0 = vector.load %arg7[%c0, %c0_0] : memref<16x128xf32, #tpu.memory_space<vmem>>, vector<16x128xf32>
    %c0_1 = arith.constant 0 : index
    %c0_2 = arith.constant 0 : index
    %1 = vector.load %arg1[%c0_1, %c0_2] : memref<8x11xf32, #tpu.memory_space<vmem>>, vector<8x11xf32>
    %2 = arith.truncf %1 : vector<8x11xf32> to vector<8x11xbf16>
    %c0_3 = arith.constant 0 : index
    %c0_4 = arith.constant 0 : index
    %3 = vector.load %arg2[%c0_3, %c0_4] : memref<11x128xbf16, #tpu.memory_space<vmem>>, vector<11x128xbf16>
    %cst = arith.constant dense<0.000000e+00> : vector<8x128xf32>
    %4 = tpu.matmul %2, %3, %cst {dimension_numbers = #tpu.dot_dimension_numbers<[1], [0], [0], [1], [0, 0, 1, 1], [], []>} : vector<8x11xbf16>, vector<11x128xbf16>, vector<8x128xf32> -> vector<8x128xf32>
    %5 = vector.extract_strided_slice %0 {offsets = [0, 0], sizes = [1, 128], strides = [1, 1]} : vector<16x128xf32> to vector<1x128xf32>
    %6 = vector.broadcast %5 : vector<1x128xf32> to vector<8x128xf32>
    %7 = arith.addf %4, %6 : vector<8x128xf32>
    %8 = vector.extract_strided_slice %0 {offsets = [1, 0], sizes = [1, 128], strides = [1, 1]} : vector<16x128xf32> to vector<1x128xf32>
    %9 = vector.extract_strided_slice %0 {offsets = [2, 0], sizes = [1, 128], strides = [1, 1]} : vector<16x128xf32> to vector<1x128xf32>
    %cst_5 = arith.constant dense<0.000000e+00> : vector<8xf32>
    %10 = vector.multi_reduction <add>, %7, %cst_5 [1] : vector<8x128xf32> to vector<8xf32>
    %11 = vector.shape_cast %10 : vector<8xf32> to vector<8x1xf32>
    %12 = arith.mulf %7, %7 : vector<8x128xf32>
    %cst_6 = arith.constant dense<0.000000e+00> : vector<8xf32>
    %13 = vector.multi_reduction <add>, %12, %cst_6 [1] : vector<8x128xf32> to vector<8xf32>
    %14 = vector.shape_cast %13 : vector<8xf32> to vector<8x1xf32>
    %cst_7 = arith.constant 7.812500e-03 : f32
    %15 = vector.broadcast %cst_7 : f32 to vector<8x1xf32>
    %16 = arith.mulf %11, %15 : vector<8x1xf32>
    %cst_8 = arith.constant 7.812500e-03 : f32
    %17 = vector.broadcast %cst_8 : f32 to vector<8x1xf32>
    %18 = arith.mulf %14, %17 : vector<8x1xf32>
    %19 = arith.mulf %16, %16 : vector<8x1xf32>
    %20 = arith.subf %18, %19 : vector<8x1xf32>
    %cst_9 = arith.constant 0.000000e+00 : f32
    %21 = vector.broadcast %cst_9 : f32 to vector<8x1xf32>
    %22 = arith.maximumf %20, %21 : vector<8x1xf32>
    %23 = vector.broadcast %16 : vector<8x1xf32> to vector<8x128xf32>
    %24 = arith.subf %7, %23 : vector<8x128xf32>
    %cst_10 = arith.constant 9.99999974E-6 : f32
    %25 = vector.broadcast %cst_10 : f32 to vector<8x1xf32>
    %26 = arith.addf %22, %25 : vector<8x1xf32>
    %27 = math.rsqrt %26 : vector<8x1xf32>
    %28 = vector.broadcast %27 : vector<8x1xf32> to vector<8x128xf32>
    %29 = arith.mulf %24, %28 : vector<8x128xf32>
    %30 = vector.broadcast %8 : vector<1x128xf32> to vector<8x128xf32>
    %31 = arith.mulf %29, %30 : vector<8x128xf32>
    %32 = vector.broadcast %9 : vector<1x128xf32> to vector<8x128xf32>
    %33 = arith.addf %31, %32 : vector<8x128xf32>
    %cst_11 = arith.constant 0.000000e+00 : f32
    %34 = vector.broadcast %cst_11 : f32 to vector<8x128xf32>
    %35 = arith.maximumf %33, %34 : vector<8x128xf32>
    %36 = arith.truncf %35 : vector<8x128xf32> to vector<8x128xbf16>
    %c0_12 = arith.constant 0 : index
    %c0_13 = arith.constant 0 : index
    %37 = vector.load %arg3[%c0_12, %c0_13] : memref<128x64xbf16, #tpu.memory_space<vmem>>, vector<128x64xbf16>
    %cst_14 = arith.constant dense<0.000000e+00> : vector<8x64xf32>
    %38 = tpu.matmul %36, %37, %cst_14 {dimension_numbers = #tpu.dot_dimension_numbers<[1], [0], [0], [1], [0, 0, 1, 1], [], []>} : vector<8x128xbf16>, vector<128x64xbf16>, vector<8x64xf32> -> vector<8x64xf32>
    %39 = vector.extract_strided_slice %0 {offsets = [3, 0], sizes = [1, 64], strides = [1, 1]} : vector<16x128xf32> to vector<1x64xf32>
    %40 = vector.broadcast %39 : vector<1x64xf32> to vector<8x64xf32>
    %41 = arith.addf %38, %40 : vector<8x64xf32>
    %42 = vector.extract_strided_slice %0 {offsets = [4, 0], sizes = [1, 64], strides = [1, 1]} : vector<16x128xf32> to vector<1x64xf32>
    %43 = vector.extract_strided_slice %0 {offsets = [5, 0], sizes = [1, 64], strides = [1, 1]} : vector<16x128xf32> to vector<1x64xf32>
    %cst_15 = arith.constant dense<0.000000e+00> : vector<8xf32>
    %44 = vector.multi_reduction <add>, %41, %cst_15 [1] : vector<8x64xf32> to vector<8xf32>
    %45 = vector.shape_cast %44 : vector<8xf32> to vector<8x1xf32>
    %46 = arith.mulf %41, %41 : vector<8x64xf32>
    %cst_16 = arith.constant dense<0.000000e+00> : vector<8xf32>
    %47 = vector.multi_reduction <add>, %46, %cst_16 [1] : vector<8x64xf32> to vector<8xf32>
    %48 = vector.shape_cast %47 : vector<8xf32> to vector<8x1xf32>
    %cst_17 = arith.constant 1.562500e-02 : f32
    %49 = vector.broadcast %cst_17 : f32 to vector<8x1xf32>
    %50 = arith.mulf %45, %49 : vector<8x1xf32>
    %cst_18 = arith.constant 1.562500e-02 : f32
    %51 = vector.broadcast %cst_18 : f32 to vector<8x1xf32>
    %52 = arith.mulf %48, %51 : vector<8x1xf32>
    %53 = arith.mulf %50, %50 : vector<8x1xf32>
    %54 = arith.subf %52, %53 : vector<8x1xf32>
    %cst_19 = arith.constant 0.000000e+00 : f32
    %55 = vector.broadcast %cst_19 : f32 to vector<8x1xf32>
    %56 = arith.maximumf %54, %55 : vector<8x1xf32>
    %57 = vector.broadcast %50 : vector<8x1xf32> to vector<8x64xf32>
    %58 = arith.subf %41, %57 : vector<8x64xf32>
    %cst_20 = arith.constant 9.99999974E-6 : f32
    %59 = vector.broadcast %cst_20 : f32 to vector<8x1xf32>
    %60 = arith.addf %56, %59 : vector<8x1xf32>
    %61 = math.rsqrt %60 : vector<8x1xf32>
    %62 = vector.broadcast %61 : vector<8x1xf32> to vector<8x64xf32>
    %63 = arith.mulf %58, %62 : vector<8x64xf32>
    %64 = vector.broadcast %42 : vector<1x64xf32> to vector<8x64xf32>
    %65 = arith.mulf %63, %64 : vector<8x64xf32>
    %66 = vector.broadcast %43 : vector<1x64xf32> to vector<8x64xf32>
    %67 = arith.addf %65, %66 : vector<8x64xf32>
    %cst_21 = arith.constant 0.000000e+00 : f32
    %68 = vector.broadcast %cst_21 : f32 to vector<8x64xf32>
    %69 = arith.maximumf %67, %68 : vector<8x64xf32>
    %70 = arith.truncf %69 : vector<8x64xf32> to vector<8x64xbf16>
    %c0_22 = arith.constant 0 : index
    %c0_23 = arith.constant 0 : index
    %71 = vector.load %arg4[%c0_22, %c0_23] : memref<64x32xbf16, #tpu.memory_space<vmem>>, vector<64x32xbf16>
    %cst_24 = arith.constant dense<0.000000e+00> : vector<8x32xf32>
    %72 = tpu.matmul %70, %71, %cst_24 {dimension_numbers = #tpu.dot_dimension_numbers<[1], [0], [0], [1], [0, 0, 1, 1], [], []>} : vector<8x64xbf16>, vector<64x32xbf16>, vector<8x32xf32> -> vector<8x32xf32>
    %73 = vector.extract_strided_slice %0 {offsets = [6, 0], sizes = [1, 32], strides = [1, 1]} : vector<16x128xf32> to vector<1x32xf32>
    %74 = vector.broadcast %73 : vector<1x32xf32> to vector<8x32xf32>
    %75 = arith.addf %72, %74 : vector<8x32xf32>
    %76 = vector.extract_strided_slice %0 {offsets = [7, 0], sizes = [1, 32], strides = [1, 1]} : vector<16x128xf32> to vector<1x32xf32>
    %77 = vector.extract_strided_slice %0 {offsets = [8, 0], sizes = [1, 32], strides = [1, 1]} : vector<16x128xf32> to vector<1x32xf32>
    %cst_25 = arith.constant dense<0.000000e+00> : vector<8xf32>
    %78 = vector.multi_reduction <add>, %75, %cst_25 [1] : vector<8x32xf32> to vector<8xf32>
    %79 = vector.shape_cast %78 : vector<8xf32> to vector<8x1xf32>
    %80 = arith.mulf %75, %75 : vector<8x32xf32>
    %cst_26 = arith.constant dense<0.000000e+00> : vector<8xf32>
    %81 = vector.multi_reduction <add>, %80, %cst_26 [1] : vector<8x32xf32> to vector<8xf32>
    %82 = vector.shape_cast %81 : vector<8xf32> to vector<8x1xf32>
    %cst_27 = arith.constant 3.125000e-02 : f32
    %83 = vector.broadcast %cst_27 : f32 to vector<8x1xf32>
    %84 = arith.mulf %79, %83 : vector<8x1xf32>
    %cst_28 = arith.constant 3.125000e-02 : f32
    %85 = vector.broadcast %cst_28 : f32 to vector<8x1xf32>
    %86 = arith.mulf %82, %85 : vector<8x1xf32>
    %87 = arith.mulf %84, %84 : vector<8x1xf32>
    %88 = arith.subf %86, %87 : vector<8x1xf32>
    %cst_29 = arith.constant 0.000000e+00 : f32
    %89 = vector.broadcast %cst_29 : f32 to vector<8x1xf32>
    %90 = arith.maximumf %88, %89 : vector<8x1xf32>
    %91 = vector.broadcast %84 : vector<8x1xf32> to vector<8x32xf32>
    %92 = arith.subf %75, %91 : vector<8x32xf32>
    %cst_30 = arith.constant 9.99999974E-6 : f32
    %93 = vector.broadcast %cst_30 : f32 to vector<8x1xf32>
    %94 = arith.addf %90, %93 : vector<8x1xf32>
    %95 = math.rsqrt %94 : vector<8x1xf32>
    %96 = vector.broadcast %95 : vector<8x1xf32> to vector<8x32xf32>
    %97 = arith.mulf %92, %96 : vector<8x32xf32>
    %98 = vector.broadcast %76 : vector<1x32xf32> to vector<8x32xf32>
    %99 = arith.mulf %97, %98 : vector<8x32xf32>
    %100 = vector.broadcast %77 : vector<1x32xf32> to vector<8x32xf32>
    %101 = arith.addf %99, %100 : vector<8x32xf32>
    %cst_31 = arith.constant 0.000000e+00 : f32
    %102 = vector.broadcast %cst_31 : f32 to vector<8x32xf32>
    %103 = arith.maximumf %101, %102 : vector<8x32xf32>
    %104 = arith.truncf %103 : vector<8x32xf32> to vector<8x32xbf16>
    %c0_32 = arith.constant 0 : index
    %c0_33 = arith.constant 0 : index
    %105 = vector.load %arg5[%c0_32, %c0_33] : memref<32x48xbf16, #tpu.memory_space<vmem>>, vector<32x48xbf16>
    %cst_34 = arith.constant dense<0.000000e+00> : vector<8x48xf32>
    %106 = tpu.matmul %104, %105, %cst_34 {dimension_numbers = #tpu.dot_dimension_numbers<[1], [0], [0], [1], [0, 0, 1, 1], [], []>} : vector<8x32xbf16>, vector<32x48xbf16>, vector<8x48xf32> -> vector<8x48xf32>
    %107 = vector.extract_strided_slice %0 {offsets = [9, 0], sizes = [1, 48], strides = [1, 1]} : vector<16x128xf32> to vector<1x48xf32>
    %108 = vector.broadcast %107 : vector<1x48xf32> to vector<8x48xf32>
    %109 = arith.addf %106, %108 : vector<8x48xf32>
    %cst_35 = arith.constant 0.000000e+00 : f32
    %110 = vector.broadcast %cst_35 : f32 to vector<8x48xf32>
    %111 = arith.maximumf %109, %110 : vector<8x48xf32>
    %112 = arith.truncf %111 : vector<8x48xf32> to vector<8x48xbf16>
    %c0_36 = arith.constant 0 : index
    %c0_37 = arith.constant 0 : index
    %113 = vector.load %arg6[%c0_36, %c0_37] : memref<48x8xbf16, #tpu.memory_space<vmem>>, vector<48x8xbf16>
    %cst_38 = arith.constant dense<0.000000e+00> : vector<8x8xf32>
    %114 = tpu.matmul %112, %113, %cst_38 {dimension_numbers = #tpu.dot_dimension_numbers<[1], [0], [0], [1], [0, 0, 1, 1], [], []>} : vector<8x48xbf16>, vector<48x8xbf16>, vector<8x8xf32> -> vector<8x8xf32>
    %115 = vector.extract_strided_slice %0 {offsets = [10, 0], sizes = [1, 8], strides = [1, 1]} : vector<16x128xf32> to vector<1x8xf32>
    %116 = vector.broadcast %115 : vector<1x8xf32> to vector<8x8xf32>
    %117 = arith.addf %114, %116 : vector<8x8xf32>
    %118 = tpu.iota {dimensions = array<i32: 1>} : vector<8x8xi32>
    %c5_i32 = arith.constant 5 : i32
    %119 = vector.broadcast %c5_i32 : i32 to vector<8x8xi32>
    %120 = arith.cmpi slt, %118, %119 : vector<8x8xi32>
    %cst_39 = arith.constant 0xFF800000 : f32
    %121 = vector.broadcast %cst_39 : f32 to vector<8x8xf32>
    %122 = arith.select %120, %117, %121 : vector<8x8xi1>, vector<8x8xf32>
    %cst_40 = arith.constant dense<0xFF800000> : vector<8xf32>
    %123 = vector.multi_reduction <maximumf>, %122, %cst_40 [1] : vector<8x8xf32> to vector<8xf32>
    %124 = vector.shape_cast %123 : vector<8xf32> to vector<8x1xf32>
    %125 = vector.broadcast %124 : vector<8x1xf32> to vector<8x8xf32>
    %126 = arith.subf %122, %125 : vector<8x8xf32>
    %127 = math.exp %126 : vector<8x8xf32>
    %cst_41 = arith.constant dense<0.000000e+00> : vector<8xf32>
    %128 = vector.multi_reduction <add>, %127, %cst_41 [1] : vector<8x8xf32> to vector<8xf32>
    %129 = vector.shape_cast %128 : vector<8xf32> to vector<8x1xf32>
    %130 = tpu.reciprocal %129 {approx = true} : vector<8x1xf32> -> vector<8x1xf32>
    %131 = vector.broadcast %130 : vector<8x1xf32> to vector<8x8xf32>
    %132 = arith.mulf %127, %131 : vector<8x8xf32>
    %cst_42 = arith.constant 5.000000e-01 : f32
    %133 = vector.broadcast %cst_42 : f32 to vector<8x8xf32>
    %134 = arith.mulf %133, %117 : vector<8x8xf32>
    %135 = math.tanh %134 : vector<8x8xf32>
    %cst_43 = arith.constant 5.000000e-01 : f32
    %136 = vector.broadcast %cst_43 : f32 to vector<8x8xf32>
    %137 = arith.mulf %136, %135 : vector<8x8xf32>
    %cst_44 = arith.constant 5.000000e-01 : f32
    %138 = vector.broadcast %cst_44 : f32 to vector<8x8xf32>
    %139 = arith.addf %137, %138 : vector<8x8xf32>
    %c5_i32_45 = arith.constant 5 : i32
    %140 = vector.broadcast %c5_i32_45 : i32 to vector<8x8xi32>
    %141 = arith.cmpi eq, %118, %140 : vector<8x8xi32>
    %142 = arith.select %141, %139, %132 : vector<8x8xi1>, vector<8x8xf32>
    %c0_46 = arith.constant 0 : index
    %c0_47 = arith.constant 0 : index
    %143 = vector.load %arg8[%c0_46, %c0_47] : memref<8x8xf32, #tpu.memory_space<vmem>>, vector<8x8xf32>
    tpu.vector_store %arg8[%c0_46, %c0_47], %142 {strides = array<i32>} : memref<8x8xf32, #tpu.memory_space<vmem>>, vector<8x8xf32>,
    return
  }
  func.func @transform_0(%arg0: i32) -> (i32, i32) {
    %c0_i32 = arith.constant 0 : i32
    %c0_i32_0 = arith.constant 0 : i32
    return %arg0, %c0_i32 : i32, i32
  }
  func.func @transform_1(%arg0: i32) -> (i32, i32) {
    %c0_i32 = arith.constant 0 : i32
    %c0_i32_0 = arith.constant 0 : i32
    %c0_i32_1 = arith.constant 0 : i32
    return %c0_i32, %c0_i32_0 : i32, i32
  }
  func.func @transform_2(%arg0: i32) -> (i32, i32) {
    %c0_i32 = arith.constant 0 : i32
    %c0_i32_0 = arith.constant 0 : i32
    %c0_i32_1 = arith.constant 0 : i32
    return %c0_i32, %c0_i32_0 : i32, i32
  }
  func.func @transform_3(%arg0: i32) -> (i32, i32) {
    %c0_i32 = arith.constant 0 : i32
    %c0_i32_0 = arith.constant 0 : i32
    %c0_i32_1 = arith.constant 0 : i32
    return %c0_i32, %c0_i32_0 : i32, i32
  }
  func.func @transform_4(%arg0: i32) -> (i32, i32) {
    %c0_i32 = arith.constant 0 : i32
    %c0_i32_0 = arith.constant 0 : i32
    %c0_i32_1 = arith.constant 0 : i32
    return %c0_i32, %c0_i32_0 : i32, i32
  }
  func.func @transform_5(%arg0: i32) -> (i32, i32) {
    %c0_i32 = arith.constant 0 : i32
    %c0_i32_0 = arith.constant 0 : i32
    %c0_i32_1 = arith.constant 0 : i32
    return %c0_i32, %c0_i32_0 : i32, i32
  }
  func.func @transform_6(%arg0: i32) -> (i32, i32) {
    %c0_i32 = arith.constant 0 : i32
    %c0_i32_0 = arith.constant 0 : i32
    %c0_i32_1 = arith.constant 0 : i32
    return %c0_i32, %c0_i32_0 : i32, i32
  }
  func.func @transform_7(%arg0: i32) -> (i32, i32) {
    %c0_i32 = arith.constant 0 : i32
    %c0_i32_0 = arith.constant 0 : i32
    return %arg0, %c0_i32 : i32, i32
  }
}

</mosaic_0001>

<llo_original>
// kernel: position_sizing_forward.1
$region0: #{position_sizing_forward.1}
  #allocation0 [shape = 'u32[]', space=smem, size = 0x4, offset = 0x4, fixed_abs, tag = 'smem constant byte address 0x4 - core index']
  #allocation1 [shape = 'u32[144,128]{1,0:T(1,128)}', space=vmem, size = 0x12000, scoped, tag = 'internal scratch']
  %s0 = inlined_call_operand.vmem [shape: f32[8,11], index: 0, kind: input, shape index: {}]
  %s1 = inlined_call_operand.hbm [shape: bf16[11,128], index: 1, kind: input, shape index: {}]
  %s2 = inlined_call_operand.vmem [shape: bf16[128,64], index: 2, kind: input, shape index: {}]
  %s3 = inlined_call_operand.hbm [shape: bf16[64,32], index: 3, kind: input, shape index: {}]
  %s4 = inlined_call_operand.hbm [shape: bf16[32,48], index: 4, kind: input, shape index: {}]
  %s5 = inlined_call_operand.hbm [shape: bf16[48,8], index: 5, kind: input, shape index: {}]
  %s6 = inlined_call_operand.hbm [shape: f32[16,128], index: 6, kind: input, shape index: {}]
  %s7 = inlined_call_operand.vmem [shape: f32[8,8], index: 7, kind: output, shape index: {}]
  %s8 = sld [smem:[#allocation0]]
  $region58: #{position_sizing_forward.1} parent=0
    _
  %s10 = ssub.s32 1, %s8
  %s11 = scalar_select 0, %s10, %s8
  $region1: #{position_sizing_forward.1} parent=0
    #allocation2 [shape = 'u8[4096]{0}', space=vmem, size = 0x1000, scoped, tag = 'input window, operand 1, single buffered']
    #allocation3 [shape = 's32[1]{0}', space=sflag, size = 0x4, scoped, tag = 'scoped memory for position_sizing_forward.1']
    #allocation4 [shape = 'u8[16384]{0}', space=vmem, size = 0x4000, scoped, tag = 'input window, operand 3, single buffered']
    #allocation5 [shape = 's32[1]{0}', space=sflag, size = 0x4, scoped, tag = 'scoped memory for position_sizing_forward.1']
    #allocation6 [shape = 'u8[8192]{0}', space=vmem, size = 0x2000, scoped, tag = 'input window, operand 4, single buffered']
    #allocation7 [shape = 'u8[12288]{0}', space=vmem, size = 0x3000, scoped, tag = 'input window, operand 5, single buffered']
    #allocation8 [shape = 's32[1]{0}', space=sflag, size = 0x4, scoped, tag = 'scoped memory for position_sizing_forward.1']
    #allocation9 [shape = 'u8[8192]{0}', space=vmem, size = 0x2000, scoped, tag = 'input window, operand 6, single buffered']
    %12 = vsyncpa [#allocation3], 0
    %13 = vsyncpa [#allocation5], 0
    %14 = vsyncpa [#allocation8], 0
    // Predicated region
    $region2: #{position_sizing_forward.1} parent=1 // pred_check
      _
    $region3: #{position_sizing_forward.1} parent=1 // pred_check_branch
      %16 = sbr.rel (0) target = $region5
    $region4: #{position_sizing_forward.1} parent=1 // pred_region
      _
    $region5: #{position_sizing_forward.1} parent=1 // pred_fallthru
      _
    // Predicated region
    $region6: #{position_sizing_forward.1} parent=1 // pred_check
      _
    $region7: #{position_sizing_forward.1} parent=1 // pred_check_branch
      %18 = sbr.rel (0) target = $region9
    $region8: #{position_sizing_forward.1} parent=1 // pred_region
      %s20 = ssub.s32 128, 128
      %21 = vsyncadd [#allocation3], %s20
      %s22 = sshll.u32 [#allocation2], 4
      %s23 = int_to_ptr.vmem [resolvable:$true] %s22
      %28 = dma.hbm_to_vmem [thread:$0]  %s1, 128, %s23, [#allocation3], 64, 64, 4
    $region9: #{position_sizing_forward.1} parent=1 // pred_fallthru
      _
    // Predicated region
    $region10: #{position_sizing_forward.1} parent=1 // pred_check
      _
    $region11: #{position_sizing_forward.1} parent=1 // pred_check_branch
      %30 = sbr.rel (0) target = $region13
    $region12: #{position_sizing_forward.1} parent=1 // pred_region
      _
    $region13: #{position_sizing_forward.1} parent=1 // pred_fallthru
      _
    // Predicated region
    $region14: #{position_sizing_forward.1} parent=1 // pred_check
      _
    $region15: #{position_sizing_forward.1} parent=1 // pred_check_branch
      %32 = sbr.rel (0) target = $region17
    $region16: #{position_sizing_forward.1} parent=1 // pred_region
      %s34 = ssub.s32 512, 512
      %35 = vsyncadd [#allocation5], %s34
      %s36 = sshll.u32 [#allocation4], 4
      %s37 = int_to_ptr.vmem [resolvable:$true] %s36
      %42 = dma.hbm_to_vmem [thread:$0]  %s3, 512, %s37, [#allocation5], 64, 64, 4
    $region17: #{position_sizing_forward.1} parent=1 // pred_fallthru
      _
    // Predicated region
    $region18: #{position_sizing_forward.1} parent=1 // pred_check
      _
    $region19: #{position_sizing_forward.1} parent=1 // pred_check_branch
      %44 = sbr.rel (0) target = $region21
    $region20: #{position_sizing_forward.1} parent=1 // pred_region
      %s46 = ssub.s32 256, 256
      %47 = vsyncadd [#allocation5], %s46
      %s48 = sshll.u32 [#allocation6], 4
      %s49 = int_to_ptr.vmem [resolvable:$true] %s48
      %54 = dma.hbm_to_vmem [thread:$0]  %s4, 256, %s49, [#allocation5], 64, 64, 4
    $region21: #{position_sizing_forward.1} parent=1 // pred_fallthru
      _
    // Predicated region
    $region22: #{position_sizing_forward.1} parent=1 // pred_check
      _
    $region23: #{position_sizing_forward.1} parent=1 // pred_check_branch
      %56 = sbr.rel (0) target = $region25
    $region24: #{position_sizing_forward.1} parent=1 // pred_region
      %s58 = ssub.s32 384, 384
      %59 = vsyncadd [#allocation8], %s58
      %s60 = sshll.u32 [#allocation7], 4
      %s61 = int_to_ptr.vmem [resolvable:$true] %s60
      %66 = dma.hbm_to_vmem [thread:$0]  %s5, 384, %s61, [#allocation8], 64, 64, 4
    $region25: #{position_sizing_forward.1} parent=1 // pred_fallthru
      _
    // Predicated region
    $region26: #{position_sizing_forward.1} parent=1 // pred_check
      _
    $region27: #{position_sizing_forward.1} parent=1 // pred_check_branch
      %68 = sbr.rel (0) target = $region29
    $region28: #{position_sizing_forward.1} parent=1 // pred_region
      %s70 = ssub.s32 256, 256
      %71 = vsyncadd [#allocation8], %s70
      %s72 = sshll.u32 [#allocation9], 4
      %s73 = int_to_ptr.vmem [resolvable:$true] %s72
      %78 = dma.hbm_to_vmem [thread:$0]  %s6, 256, %s73, [#allocation8], 128, 128, 8
    $region29: #{position_sizing_forward.1} parent=1 // pred_fallthru
      _
    // Predicated region
    $region30: #{position_sizing_forward.1} parent=1 // pred_check
      _
    $region31: #{position_sizing_forward.1} parent=1 // pred_check_branch
      %80 = sbr.rel (0) target = $region33
    $region32: #{position_sizing_forward.1} parent=1 // pred_region
      %81 = dma.done [#allocation3], 128
    $region33: #{position_sizing_forward.1} parent=1 // pred_fallthru
      _
    // Predicated region
    $region34: #{position_sizing_forward.1} parent=1 // pred_check
      _
    $region35: #{position_sizing_forward.1} parent=1 // pred_check_branch
      %83 = sbr.rel (0) target = $region37
    $region36: #{position_sizing_forward.1} parent=1 // pred_region
      %84 = dma.done [#allocation5], 512
    $region37: #{position_sizing_forward.1} parent=1 // pred_fallthru
      _
    // Predicated region
    $region38: #{position_sizing_forward.1} parent=1 // pred_check
      _
    $region39: #{position_sizing_forward.1} parent=1 // pred_check_branch
      %86 = sbr.rel (0) target = $region41
    $region40: #{position_sizing_forward.1} parent=1 // pred_region
      %87 = dma.done [#allocation5], 256
    $region41: #{position_sizing_forward.1} parent=1 // pred_fallthru
      _
    // Predicated region
    $region42: #{position_sizing_forward.1} parent=1 // pred_check
      _
    $region43: #{position_sizing_forward.1} parent=1 // pred_check_branch
      %89 = sbr.rel (0) target = $region45
    $region44: #{position_sizing_forward.1} parent=1 // pred_region
      %90 = dma.done [#allocation8], 384
    $region45: #{position_sizing_forward.1} parent=1 // pred_fallthru
      _
    // Predicated region
    $region46: #{position_sizing_forward.1} parent=1 // pred_check
      _
    $region47: #{position_sizing_forward.1} parent=1 // pred_check_branch
      %92 = sbr.rel (0) target = $region49
    $region48: #{position_sizing_forward.1} parent=1 // pred_region
      %93 = dma.done [#allocation8], 256
    $region49: #{position_sizing_forward.1} parent=1 // pred_fallthru
      _
    %v95 = vld [vmem:[#allocation9] sm:$0xff]
    %v96 = vld [vmem:[#allocation9 + $0x8] sm:$0xff]
    %v97 = vld [vmem:[%s0] sm:$0xff]
    %v98 = vpack.c.bf16 %v97, %v97
    %v99 = vld [vmem:[#allocation2] sm:$0xf]
    %v100 = vld [vmem:[#allocation2 + $0x4] sm:$0x3]
    %v101 = vlaneseq
    %v102 = vshrl.u32 %v101, 7
    %v103 = vsub.s32 0, %v102
    %v104 = vrot.slane %v95, %v103
    %v107 = vunpack.c.l.b16 %v99
    %v108 = vunpack.c.l.b16 %v100
    %v109 = vpack.c.b16 %v108, %v107
    %vm110 = vcmask 89088
    %v112 = vsel %vm110, %v98, 0
    %vm114 = vcmask 1044480
    %vm115 = vcmask 1045504
    %v116 = vsel %vm114, 4294967295, 65535
    %v117 = vsel %vm115, %v116, 0
    %v119 = vand.u32 %v109, %v117
    %121 = vmatprep.subr.bf16.mxu0 0
    %122 = vmatpush1.bf16.msra.mxu0 %v119
    %123 = vmatprep.subr.bf16.mxu0 0
    %124 = vmatpush1.bf16.msra.mxu0 0
    %125 = vmatprep.subr.bf16.mxu0 0
    %126 = vmatpush1.bf16.msra.mxu0 0
    %127 = vmatprep.subr.bf16.mxu0 0
    %128 = vmatpush1.bf16.msra.mxu0 0
    %129 = vmatprep.subr.bf16.mxu0 0
    %130 = vmatpush1.bf16.msra.mxu0 0
    %131 = vmatprep.subr.bf16.mxu0 0
    %132 = vmatpush1.bf16.msra.mxu0 0
    %133 = vmatprep.subr.bf16.mxu0 0
    %134 = vmatpush1.bf16.msra.mxu0 0
    %135 = vmatprep.subr.bf16.mxu0 0
    %136 = vmatpush1.bf16.msra.mxu0 0
    %137 = vmatprep.subr.bf16.mxu0 0
    %138 = vmatpush1.bf16.msra.mxu0 0
    %139 = vmatprep.subr.bf16.mxu0 0
    %140 = vmatpush1.bf16.msra.mxu0 0
    %141 = vmatprep.subr.bf16.mxu0 0
    %142 = vmatpush1.bf16.msra.mxu0 0
    %143 = vmatprep.subr.bf16.mxu0 0
    %144 = vmatpush1.bf16.msra.mxu0 0
    %145 = vmatprep.subr.bf16.mxu0 0
    %146 = vmatpush1.bf16.msra.mxu0 0
    %147 = vmatprep.subr.bf16.mxu0 0
    %148 = vmatpush1.bf16.msra.mxu0 0
    %149 = vmatprep.subr.bf16.mxu0 0
    %150 = vmatpush1.bf16.msra.mxu0 0
    %151 = vmatprep.subr.bf16.mxu0 0
    %152 = vmatpush1.bf16.msra.mxu0 0
    %153 = vmatprep.mubr.bf16.mxu0 0
    %154 = vmatmul.mubr.bf16.gmra.mrb[0].mxu0 %v112
    %v155 = vpop.f32.mrb[0].mxu0
    %v156 = vadd.f32 %v104, %v155
    %v157 = vpop.f32.mrb[0].mxu0
    %v158 = vpop.f32.mrb[0].mxu0
    %v159 = vpop.f32.mrb[0].mxu0
    %160 = vdwg.mxu0
    %161 = vadd.xlane.f32.xlu0 %v156
    %v162 = vpop.xlane.xlu0 %161
    %v163 = vmul.f32 %v156, %v156
    %164 = vadd.xlane.f32.xlu0 %v163
    %v165 = vpop.xlane.xlu0 %164
    %v166 = vmul.f32 %v162, 0.0078125
    %v167 = vmul.f32 %v165, 0.0078125
    %v168 = vmul.f32 %v166, %v166
    %v169 = vsub.f32 %v167, %v168
    %v170 = vmax.f32 %v169, 0.0
    %v171 = vsub.f32 %v156, %v166
    %v172 = vadd.f32 %v170, 1e-05
    %v173 = vrsqrt.pop %v172
    %v174 = vmul.f32 %v171, %v173
    %v175 = vlaneseq
    %v176 = vshrl.u32 %v175, 7
    %v177 = vsub.s32 1, %v176
    %v178 = vrot.slane %v95, %v177
    %v179 = vmul.f32 %v174, %v178
    %v180 = vlaneseq
    %v181 = vshrl.u32 %v180, 7
    %v182 = vsub.s32 2, %v181
    %v183 = vrot.slane %v95, %v182
    %v184 = vadd.f32 %v179, %v183
    %v185 = vmax.f32 %v184, 0.0
    %v186 = vpack.c.bf16 %v185, %v185
    %v187 = vld [vmem:[%s2] sm:$0xf]
    %v188 = vld [vmem:[%s2 + $0x4] sm:$0xf]
    %v189 = vld [vmem:[%s2 + $0x8] sm:$0xf]
    %v190 = vld [vmem:[%s2 + $0xc] sm:$0xf]
    %v191 = vld [vmem:[%s2 + $0x10] sm:$0xf]
    %v192 = vld [vmem:[%s2 + $0x14] sm:$0xf]
    %v193 = vld [vmem:[%s2 + $0x18] sm:$0xf]
    %v194 = vld [vmem:[%s2 + $0x1c] sm:$0xf]
    %v195 = vld [vmem:[%s2 + $0x20] sm:$0xf]
    %v196 = vld [vmem:[%s2 + $0x24] sm:$0xf]
    %v197 = vld [vmem:[%s2 + $0x28] sm:$0xf]
    %v198 = vld [vmem:[%s2 + $0x2c] sm:$0xf]
    %v199 = vld [vmem:[%s2 + $0x30] sm:$0xf]
    %v200 = vld [vmem:[%s2 + $0x34] sm:$0xf]
    %v201 = vld [vmem:[%s2 + $0x38] sm:$0xf]
    %v202 = vld [vmem:[%s2 + $0x3c] sm:$0xf]
    %v203 = vlaneseq
    %v204 = vshrl.u32 %v203, 7
    %v205 = vsub.s32 3, %v204
    %v206 = vrot.slane %v95, %v205
    %v223 = vunpack.c.l.b16 %v187
    %v224 = vunpack.c.l.b16 %v188
    %v225 = vunpack.c.l.b16 %v189
    %v226 = vunpack.c.l.b16 %v190
    %v227 = vunpack.c.l.b16 %v191
    %v228 = vunpack.c.l.b16 %v192
    %v229 = vunpack.c.l.b16 %v193
    %v230 = vunpack.c.l.b16 %v194
    %v231 = vunpack.c.l.b16 %v195
    %v232 = vunpack.c.l.b16 %v196
    %v233 = vunpack.c.l.b16 %v197
    %v234 = vunpack.c.l.b16 %v198
    %v235 = vunpack.c.l.b16 %v199
    %v236 = vunpack.c.l.b16 %v200
    %v237 = vunpack.c.l.b16 %v201
    %v238 = vunpack.c.l.b16 %v202
    %v239 = vpack.c.b16 %v224, %v223
    %v240 = vpack.c.b16 %v226, %v225
    %v241 = vpack.c.b16 %v228, %v227
    %v242 = vpack.c.b16 %v230, %v229
    %v243 = vpack.c.b16 %v232, %v231
    %v244 = vpack.c.b16 %v234, %v233
    %v245 = vpack.c.b16 %v236, %v235
    %v246 = vpack.c.b16 %v238, %v237
    %255 = vmatprep.subr.bf16.mxu0 0
    %256 = vmatpush1.bf16.msra.mxu0 %v239
    %257 = vmatprep.subr.bf16.mxu0 0
    %258 = vmatpush1.bf16.msra.mxu0 %v240
    %259 = vmatprep.subr.bf16.mxu0 0
    %260 = vmatpush1.bf16.msra.mxu0 %v241
    %261 = vmatprep.subr.bf16.mxu0 0
    %262 = vmatpush1.bf16.msra.mxu0 %v242
    %263 = vmatprep.subr.bf16.mxu0 0
    %264 = vmatpush1.bf16.msra.mxu0 %v243
    %265 = vmatprep.subr.bf16.mxu0 0
    %266 = vmatpush1.bf16.msra.mxu0 %v244
    %267 = vmatprep.subr.bf16.mxu0 0
    %268 = vmatpush1.bf16.msra.mxu0 %v245
    %269 = vmatprep.subr.bf16.mxu0 0
    %270 = vmatpush1.bf16.msra.mxu0 %v246
    %271 = vmatprep.subr.bf16.mxu0 0
    %272 = vmatpush1.bf16.msra.mxu0 0
    %273 = vmatprep.subr.bf16.mxu0 0
    %274 = vmatpush1.bf16.msra.mxu0 0
    %275 = vmatprep.subr.bf16.mxu0 0
    %276 = vmatpush1.bf16.msra.mxu0 0
    %277 = vmatprep.subr.bf16.mxu0 0
    %278 = vmatpush1.bf16.msra.mxu0 0
    %279 = vmatprep.subr.bf16.mxu0 0
    %280 = vmatpush1.bf16.msra.mxu0 0
    %281 = vmatprep.subr.bf16.mxu0 0
    %282 = vmatpush1.bf16.msra.mxu0 0
    %283 = vmatprep.subr.bf16.mxu0 0
    %284 = vmatpush1.bf16.msra.mxu0 0
    %285 = vmatprep.subr.bf16.mxu0 0
    %286 = vmatpush1.bf16.msra.mxu0 0
    %287 = vmatprep.mubr.bf16.mxu0 0
    %288 = vmatmul.mubr.bf16.gmra.mrb[0].mxu0 %v186
    %v289 = vpop.f32.mrb[0].mxu0
    %v290 = vadd.f32 %v206, %v289
    %v291 = vpop.f32.mrb[0].mxu0
    %v292 = vpop.f32.mrb[0].mxu0
    %v293 = vpop.f32.mrb[0].mxu0
    %294 = vdwg.mxu0
    %vm295 = vcmask 523264
    %v296 = vsel %vm295, %v290, 0.0
    %297 = vadd.xlane.f32.xlu0 %v296
    %v298 = vpop.xlane.xlu0 %297
    %v299 = vmul.f32 %v290, %v290
    %v300 = vsel %vm295, %v299, 0.0
    %301 = vadd.xlane.f32.xlu0 %v300
    %v302 = vpop.xlane.xlu0 %301
    %v303 = vmul.f32 %v298, 0.015625
    %v304 = vmul.f32 %v302, 0.015625
    %v305 = vmul.f32 %v303, %v303
    %v306 = vsub.f32 %v304, %v305
    %v307 = vmax.f32 %v306, 0.0
    %v308 = vsub.f32 %v290, %v303
    %v309 = vadd.f32 %v307, 1e-05
    %v310 = vrsqrt.pop %v309
    %v311 = vmul.f32 %v308, %v310
    %v312 = vlaneseq
    %v313 = vshrl.u32 %v312, 7
    %v314 = vsub.s32 4, %v313
    %v315 = vrot.slane %v95, %v314
    %v316 = vmul.f32 %v311, %v315
    %v317 = vlaneseq
    %v318 = vshrl.u32 %v317, 7
    %v319 = vsub.s32 5, %v318
    %v320 = vrot.slane %v95, %v319
    %v321 = vadd.f32 %v316, %v320
    %v322 = vmax.f32 %v321, 0.0
    %v323 = vpack.c.bf16 %v322, %v322
    %v324 = vld [vmem:[#allocation4] sm:$0xf]
    %v325 = vld [vmem:[#allocation4 + $0x4] sm:$0xf]
    %v326 = vld [vmem:[#allocation4 + $0x8] sm:$0xf]
    %v327 = vld [vmem:[#allocation4 + $0xc] sm:$0xf]
    %v328 = vld [vmem:[#allocation4 + $0x10] sm:$0xf]
    %v329 = vld [vmem:[#allocation4 + $0x14] sm:$0xf]
    %v330 = vld [vmem:[#allocation4 + $0x18] sm:$0xf]
    %v331 = vld [vmem:[#allocation4 + $0x1c] sm:$0xf]
    %v332 = vlaneseq
    %v333 = vshrl.u32 %v332, 7
    %v334 = vsub.s32 6, %v333
    %v335 = vrot.slane %v95, %v334
    %v344 = vunpack.c.l.b16 %v324
    %v345 = vunpack.c.l.b16 %v325
    %v346 = vunpack.c.l.b16 %v326
    %v347 = vunpack.c.l.b16 %v327
    %v348 = vunpack.c.l.b16 %v328
    %v349 = vunpack.c.l.b16 %v329
    %v350 = vunpack.c.l.b16 %v330
    %v351 = vunpack.c.l.b16 %v331
    %v352 = vpack.c.b16 %v345, %v344
    %v353 = vpack.c.b16 %v347, %v346
    %v354 = vpack.c.b16 %v349, %v348
    %v355 = vpack.c.b16 %v351, %v350
    %v361 = vsel %vm295, %v323, 0
    %363 = vmatprep.subr.bf16.mxu0 0
    %364 = vmatpush1.bf16.msra.mxu0 %v352
    %365 = vmatprep.subr.bf16.mxu0 0
    %366 = vmatpush1.bf16.msra.mxu0 %v353
    %367 = vmatprep.subr.bf16.mxu0 0
    %368 = vmatpush1.bf16.msra.mxu0 %v354
    %369 = vmatprep.subr.bf16.mxu0 0
    %370 = vmatpush1.bf16.msra.mxu0 %v355
    %371 = vmatprep.subr.bf16.mxu0 0
    %372 = vmatpush1.bf16.msra.mxu0 0
    %373 = vmatprep.subr.bf16.mxu0 0
    %374 = vmatpush1.bf16.msra.mxu0 0
    %375 = vmatprep.subr.bf16.mxu0 0
    %376 = vmatpush1.bf16.msra.mxu0 0
    %377 = vmatprep.subr.bf16.mxu0 0
    %378 = vmatpush1.bf16.msra.mxu0 0
    %379 = vmatprep.subr.bf16.mxu0 0
    %380 = vmatpush1.bf16.msra.mxu0 0
    %381 = vmatprep.subr.bf16.mxu0 0
    %382 = vmatpush1.bf16.msra.mxu0 0
    %383 = vmatprep.subr.bf16.mxu0 0
    %384 = vmatpush1.bf16.msra.mxu0 0
    %385 = vmatprep.subr.bf16.mxu0 0
    %386 = vmatpush1.bf16.msra.mxu0 0
    %387 = vmatprep.subr.bf16.mxu0 0
    %388 = vmatpush1.bf16.msra.mxu0 0
    %389 = vmatprep.subr.bf16.mxu0 0
    %390 = vmatpush1.bf16.msra.mxu0 0
    %391 = vmatprep.subr.bf16.mxu0 0
    %392 = vmatpush1.bf16.msra.mxu0 0
    %393 = vmatprep.subr.bf16.mxu0 0
    %394 = vmatpush1.bf16.msra.mxu0 0
    %395 = vmatprep.mubr.bf16.mxu0 0
    %396 = vmatmul.mubr.bf16.gmra.mrb[0].mxu0 %v361
    %v397 = vpop.f32.mrb[0].mxu0
    %v398 = vadd.f32 %v335, %v397
    %v399 = vpop.f32.mrb[0].mxu0
    %v400 = vpop.f32.mrb[0].mxu0
    %v401 = vpop.f32.mrb[0].mxu0
    %402 = vdwg.mxu0
    %vm403 = vcmask 261120
    %v404 = vsel %vm403, %v398, 0.0
    %405 = vadd.xlane.f32.xlu0 %v404
    %v406 = vpop.xlane.xlu0 %405
    %v407 = vmul.f32 %v398, %v398
    %v408 = vsel %vm403, %v407, 0.0
    %409 = vadd.xlane.f32.xlu0 %v408
    %v410 = vpop.xlane.xlu0 %409
    %v411 = vmul.f32 %v406, 0.03125
    %v412 = vmul.f32 %v410, 0.03125
    %v413 = vmul.f32 %v411, %v411
    %v414 = vsub.f32 %v412, %v413
    %v415 = vmax.f32 %v414, 0.0
    %v416 = vsub.f32 %v398, %v411
    %v417 = vadd.f32 %v415, 1e-05
    %v418 = vrsqrt.pop %v417
    %v419 = vmul.f32 %v416, %v418
    %v420 = vlaneseq
    %v421 = vshrl.u32 %v420, 7
    %v422 = vsub.s32 7, %v421
    %v423 = vrot.slane %v95, %v422
    %v424 = vmul.f32 %v419, %v423
    %v425 = vlaneseq
    %v426 = vshrl.u32 %v425, 7
    %v427 = vsub.s32 0, %v426
    %v428 = vrot.slane %v96, %v427
    %v429 = vadd.f32 %v424, %v428
    %v430 = vmax.f32 %v429, 0.0
    %v431 = vpack.c.bf16 %v430, %v430
    %v432 = vld [vmem:[#allocation6] sm:$0xf]
    %v433 = vld [vmem:[#allocation6 + $0x4] sm:$0xf]
    %v434 = vld [vmem:[#allocation6 + $0x8] sm:$0xf]
    %v435 = vld [vmem:[#allocation6 + $0xc] sm:$0xf]
    %v436 = vlaneseq
    %v437 = vshrl.u32 %v436, 7
    %v438 = vsub.s32 1, %v437
    %v439 = vrot.slane %v96, %v438
    %v444 = vunpack.c.l.b16 %v432
    %v445 = vunpack.c.l.b16 %v433
    %v446 = vunpack.c.l.b16 %v434
    %v447 = vunpack.c.l.b16 %v435
    %v448 = vpack.c.b16 %v445, %v444
    %v449 = vpack.c.b16 %v447, %v446
    %v453 = vsel %vm403, %v431, 0
    %455 = vmatprep.subr.bf16.mxu0 0
    %456 = vmatpush1.bf16.msra.mxu0 %v448
    %457 = vmatprep.subr.bf16.mxu0 0
    %458 = vmatpush1.bf16.msra.mxu0 %v449
    %459 = vmatprep.subr.bf16.mxu0 0
    %460 = vmatpush1.bf16.msra.mxu0 0
    %461 = vmatprep.subr.bf16.mxu0 0
    %462 = vmatpush1.bf16.msra.mxu0 0
    %463 = vmatprep.subr.bf16.mxu0 0
    %464 = vmatpush1.bf16.msra.mxu0 0
    %465 = vmatprep.subr.bf16.mxu0 0
    %466 = vmatpush1.bf16.msra.mxu0 0
    %467 = vmatprep.subr.bf16.mxu0 0
    %468 = vmatpush1.bf16.msra.mxu0 0
    %469 = vmatprep.subr.bf16.mxu0 0
    %470 = vmatpush1.bf16.msra.mxu0 0
    %471 = vmatprep.subr.bf16.mxu0 0
    %472 = vmatpush1.bf16.msra.mxu0 0
    %473 = vmatprep.subr.bf16.mxu0 0
    %474 = vmatpush1.bf16.msra.mxu0 0
    %475 = vmatprep.subr.bf16.mxu0 0
    %476 = vmatpush1.bf16.msra.mxu0 0
    %477 = vmatprep.subr.bf16.mxu0 0
    %478 = vmatpush1.bf16.msra.mxu0 0
    %479 = vmatprep.subr.bf16.mxu0 0
    %480 = vmatpush1.bf16.msra.mxu0 0
    %481 = vmatprep.subr.bf16.mxu0 0
    %482 = vmatpush1.bf16.msra.mxu0 0
    %483 = vmatprep.subr.bf16.mxu0 0
    %484 = vmatpush1.bf16.msra.mxu0 0
    %485 = vmatprep.subr.bf16.mxu0 0
    %486 = vmatpush1.bf16.msra.mxu0 0
    %487 = vmatprep.mubr.bf16.mxu0 0
    %488 = vmatmul.mubr.bf16.gmra.mrb[0].mxu0 %v453
    %v489 = vpop.f32.mrb[0].mxu0
    %v490 = vadd.f32 %v439, %v489
    %v491 = vpop.f32.mrb[0].mxu0
    %v492 = vpop.f32.mrb[0].mxu0
    %v493 = vpop.f32.mrb[0].mxu0
    %494 = vdwg.mxu0
    %v495 = vmax.f32 %v490, 0.0
    %v496 = vpack.c.bf16 %v495, %v495
    %v497 = vld [vmem:[#allocation7] sm:$0xf]
    %v498 = vld [vmem:[#allocation7 + $0x4] sm:$0xf]
    %v499 = vld [vmem:[#allocation7 + $0x8] sm:$0xf]
    %v500 = vld [vmem:[#allocation7 + $0xc] sm:$0xf]
    %v501 = vld [vmem:[#allocation7 + $0x10] sm:$0xf]
    %v502 = vld [vmem:[#allocation7 + $0x14] sm:$0xf]
    %v503 = vlaneseq
    %v504 = vshrl.u32 %v503, 7
    %v505 = vsub.s32 2, %v504
    %v506 = vrot.slane %v96, %v505
    %v513 = vunpack.c.l.b16 %v497
    %v514 = vunpack.c.l.b16 %v498
    %v515 = vunpack.c.l.b16 %v499
    %v516 = vunpack.c.l.b16 %v500
    %v517 = vunpack.c.l.b16 %v501
    %v518 = vunpack.c.l.b16 %v502
    %v519 = vpack.c.b16 %v514, %v513
    %v520 = vpack.c.b16 %v516, %v515
    %v521 = vpack.c.b16 %v518, %v517
    %vm525 = vcmask 392192
    %v527 = vsel %vm525, %v496, 0
    %529 = vmatprep.subr.bf16.mxu0 0
    %530 = vmatpush1.bf16.msra.mxu0 %v519
    %531 = vmatprep.subr.bf16.mxu0 0
    %532 = vmatpush1.bf16.msra.mxu0 %v520
    %533 = vmatprep.subr.bf16.mxu0 0
    %534 = vmatpush1.bf16.msra.mxu0 %v521
    %535 = vmatprep.subr.bf16.mxu0 0
    %536 = vmatpush1.bf16.msra.mxu0 0
    %537 = vmatprep.subr.bf16.mxu0 0
    %538 = vmatpush1.bf16.msra.mxu0 0
    %539 = vmatprep.subr.bf16.mxu0 0
    %540 = vmatpush1.bf16.msra.mxu0 0
    %541 = vmatprep.subr.bf16.mxu0 0
    %542 = vmatpush1.bf16.msra.mxu0 0
    %543 = vmatprep.subr.bf16.mxu0 0
    %544 = vmatpush1.bf16.msra.mxu0 0
    %545 = vmatprep.subr.bf16.mxu0 0
    %546 = vmatpush1.bf16.msra.mxu0 0
    %547 = vmatprep.subr.bf16.mxu0 0
    %548 = vmatpush1.bf16.msra.mxu0 0
    %549 = vmatprep.subr.bf16.mxu0 0
    %550 = vmatpush1.bf16.msra.mxu0 0
    %551 = vmatprep.subr.bf16.mxu0 0
    %552 = vmatpush1.bf16.msra.mxu0 0
    %553 = vmatprep.subr.bf16.mxu0 0
    %554 = vmatpush1.bf16.msra.mxu0 0
    %555 = vmatprep.subr.bf16.mxu0 0
    %556 = vmatpush1.bf16.msra.mxu0 0
    %557 = vmatprep.subr.bf16.mxu0 0
    %558 = vmatpush1.bf16.msra.mxu0 0
    %559 = vmatprep.subr.bf16.mxu0 0
    %560 = vmatpush1.bf16.msra.mxu0 0
    %561 = vmatprep.mubr.bf16.mxu0 0
    %562 = vmatmul.mubr.bf16.gmra.mrb[0].mxu0 %v527
    %v563 = vpop.f32.mrb[0].mxu0
    %v564 = vadd.f32 %v506, %v563
    %v565 = vpop.f32.mrb[0].mxu0
    %v566 = vpop.f32.mrb[0].mxu0
    %v567 = vpop.f32.mrb[0].mxu0
    %568 = vdwg.mxu0
    %v569 = vlaneseq
    %v570 = vand.u32 %v569, 127
    %vm571 = vcmp.lt.s32.totalorder %v570, 5
    %v572 = vsel %vm571, %v564, -inf
    %vm573 = vcmask 64512
    %v574 = vsel %vm573, %v572, -inf
    %575 = vmax.xlane.f32.xlu0 %v574
    %v576 = vpop.xlane.xlu0 %575
    %v577 = vsub.f32 %v572, %v576
    %v578 = vmul.f32 %v577, 1.442695
    %v579 = vpow.pop %v578
    %v580 = vsel %vm573, %v579, 0.0
    %581 = vadd.xlane.f32.xlu0 %v580
    %v582 = vpop.xlane.xlu0 %581
    %v583 = vrcp.pop %v582
    %v584 = vmul.f32 %v579, %v583
    %v585 = vmul.f32 %v564, 0.5
    %v586 = vtanh.pop %v585
    %v587 = vmul.f32 %v586, 0.5
    %v588 = vadd.f32 %v587, 0.5
    %vm589 = vcmp.eq.s32.totalorder %v570, 5
    %v590 = vsel %vm589, %v588, %v584
    %591 = vst.msk [vmem:[%s7] sm:$0xff] %vm573, %v590
    // Predicated region
    $region50: #{position_sizing_forward.1} parent=1 // pred_check
      _
    $region51: #{position_sizing_forward.1} parent=1 // pred_check_branch
      %593 = sbr.rel (0) target = $region53
    $region52: #{position_sizing_forward.1} parent=1 // pred_region
      _
    $region53: #{position_sizing_forward.1} parent=1 // pred_fallthru
      _
    // Predicated region
    $region54: #{position_sizing_forward.1} parent=1 // pred_check
      _
    $region55: #{position_sizing_forward.1} parent=1 // pred_check_branch
      %595 = sbr.rel (0) target = $region57
    $region56: #{position_sizing_forward.1} parent=1 // pred_region
      _
    $region57: #{position_sizing_forward.1} parent=1 // pred_fallthru
      _
    %596 = vsyncpa [#allocation3], 1
    %597 = vsyncpa [#allocation5], 1
    %598 = vsyncpa [#allocation8], 1

</llo_original>
